<compile_context>
chip_gen: v7x
topology: tpu7x:2x2x1
jax: 0.10.0
libtpu: 0.0.40
codegen_flags: <defaults>
</compile_context>

<pallas_src>
import jax
import jax.numpy as jnp
from jax.experimental import pallas as pl
from jax.experimental.pallas import tpu as pltpu


_TV = 512       # indices processed per grid step (multiple of 8)
_LANE = 128     # TPU lane width
_TB_CAP = 2048  # max output columns per tile: (TV, TB) int32 intermediate ~4 MiB


def _index_put_acc_kernel(in_ref, idx_ref, val_ref, out_ref):
    j = pl.program_id(0)          # output column tile  ("parallel")
    i = pl.program_id(1)          # index chunk         ("arbitrary" / reduction)

    # First index chunk for this column tile: initialize output with the input.
    @pl.when(i == 0)
    def _():
        out_ref[...] = in_ref[...]

    idx = idx_ref[...]            # (TV, 1) int32
    val = val_ref[...]            # (TV, 1) data dtype
    tb = out_ref.shape[1]

    # Hoisted tile-offset math: shift the small index vector, not a big iota.
    idx_local = idx - j * tb                                       # (TV, 1)
    lane = jax.lax.broadcasted_iota(jnp.int32, (1, tb), 1)         # (1, tb)

    # Vectorized one-hot scatter-add; duplicate indices accumulate via the sum.
    hit = idx_local == lane                                        # (TV, tb)
    contrib = jnp.sum(jnp.where(hit, val, 0), axis=0, keepdims=True)  # (1, tb)
    out_ref[...] = out_ref[...] + contrib


def index_put_accumulate(inp, index, value):
    """out = inp; out[index[i]] += value[i] for all i (duplicates accumulate)."""
    assert inp.ndim == 1 and index.ndim == 1 and value.ndim == 1
    assert index.shape[0] == value.shape[0]
    b = inp.shape[0]
    n = index.shape[0]
    assert b < 2**31, "int32 index path requires len(input) < 2**31"

    # TPU kernel works in 32-bit (torch spec is int64); fine while b < 2**31
    # and accumulated sums fit in int32.
    idx = index.astype(jnp.int32)
    idx = jnp.where(idx < 0, idx + b, idx)       # PyTorch negative indexing
    val = value.astype(inp.dtype)

    # Column tile width: whole output if it fits the cap, else capped tiles
    # (keeps the (TV, tb) intermediate a few MiB and gives >= 2 parallel tiles
    # on large inputs for the v7x second TensorCore).
    b_lane = pl.cdiv(b, _LANE) * _LANE
    tb = b_lane if b_lane <= _TB_CAP else _TB_CAP
    b_pad = pl.cdiv(b, tb) * tb                  # multiple of tb (and 128)

    # Index chunks: >= one full chunk even when n == 0 so copy-init always runs.
    n_pad = pl.cdiv(max(n, 1), _TV) * _TV

    # Wrapper-side padding only when actually needed (reshape is free).
    if b_pad == b:
        inp_p = inp.reshape(1, b_pad)
    else:
        inp_p = jnp.pad(inp, (0, b_pad - b)).reshape(1, b_pad)

    if n_pad == n:
        idx_p = idx.reshape(n_pad, 1)
        val_p = val.reshape(n_pad, 1)
    else:
        idx_p = jnp.pad(idx, (0, n_pad - n), constant_values=-1).reshape(n_pad, 1)
        val_p = jnp.pad(val, (0, n_pad - n)).reshape(n_pad, 1)

    out2d = pl.pallas_call(
        _index_put_acc_kernel,
        out_shape=jax.ShapeDtypeStruct((1, b_pad), inp.dtype),
        grid=(b_pad // tb, n_pad // _TV),
        in_specs=[
            pl.BlockSpec((1, tb), lambda j, i: (0, j)),     # input (const over i)
            pl.BlockSpec((_TV, 1), lambda j, i: (i, 0)),    # index chunk
            pl.BlockSpec((_TV, 1), lambda j, i: (i, 0)),    # value chunk
        ],
        out_specs=pl.BlockSpec((1, tb), lambda j, i: (0, j)),  # resident over i
        compiler_params=pltpu.CompilerParams(
            dimension_semantics=("parallel", "arbitrary"),
            vmem_limit_bytes=32 * 1024 * 1024),
    )(inp_p, idx_p, val_p)

    if b_pad == b:
        return out2d.reshape(b)
    return out2d[0, :b]


if __name__ == "__main__":
    key = jax.random.PRNGKey(0)
    k_in, k_idx, k_val = jax.random.split(key, 3)

    B, N = 300, 400                              # small 1-D shapes; N > B => duplicates
    inp = jax.random.randint(k_in, (B,), -100, 100, dtype=jnp.int32)
    index = jax.random.randint(k_idx, (N,), 0, B, dtype=jnp.int32)
    index = index.at[1].set(index[0])            # force at least one duplicate
    value = jax.random.randint(k_val, (N,), -100, 100, dtype=jnp.int32)

    out = jax.block_until_ready(index_put_accumulate(inp, index, value))

    # Pure-JAX reference (scatter-add; duplicates accumulate).
    ref = inp.at[index].add(value)
    assert out.shape == ref.shape and out.dtype == ref.dtype
    assert jnp.array_equal(out, ref), "mismatch vs reference"

    print("KERNEL_OK")
</pallas_src>

<mosaic_0001>
module attributes {stable_mosaic.version = 11 : i64} {
  func.func @_index_put_acc_kernel(%arg0: i32, %arg1: i32, %arg2: memref<1x384xi32, #tpu.memory_space<vmem>>, %arg3: memref<512x1xi32, #tpu.memory_space<vmem>>, %arg4: memref<512x1xi32, #tpu.memory_space<vmem>>, %arg5: memref<1x384xi32, #tpu.memory_space<vmem>>) attributes {dimension_semantics = [#tpu.dimension_semantics<parallel>, #tpu.dimension_semantics<arbitrary>], iteration_bounds = array<i64: 1, 1>, scalar_prefetch = 0 : i64, scratch_operands = 0 : i64, tpu.core_type = #tpu.core_type<tc>, window_params = [{transform_indices = @transform_0, window_bounds = array<i64: 1, 384>}, {transform_indices = @transform_1, window_bounds = array<i64: 512, 1>}, {transform_indices = @transform_2, window_bounds = array<i64: 512, 1>}, {transform_indices = @transform_3, window_bounds = array<i64: 1, 384>}]} {
    %c0_i32 = arith.constant 0 : i32
    %0 = arith.cmpi eq, %arg1, %c0_i32 : i32
    %1 = arith.extui %0 : i1 to i32
    %c0_i32_0 = arith.constant 0 : i32
    %2 = arith.cmpi ne, %1, %c0_i32_0 : i32
    scf.if %2 {
      %c0_9 = arith.constant 0 : index
      %c0_10 = arith.constant 0 : index
      %21 = vector.load %arg2[%c0_9, %c0_10] : memref<1x384xi32, #tpu.memory_space<vmem>>, vector<1x384xi32>
      %c0_11 = arith.constant 0 : index
      %c0_12 = arith.constant 0 : index
      %22 = vector.load %arg5[%c0_11, %c0_12] : memref<1x384xi32, #tpu.memory_space<vmem>>, vector<1x384xi32>
      tpu.vector_store %arg5[%c0_11, %c0_12], %21 {strides = array<i32>} : memref<1x384xi32, #tpu.memory_space<vmem>>, vector<1x384xi32>,
    } else {
    }
    %c0 = arith.constant 0 : index
    %c0_1 = arith.constant 0 : index
    %3 = vector.load %arg3[%c0, %c0_1] : memref<512x1xi32, #tpu.memory_space<vmem>>, vector<512x1xi32>
    %c0_2 = arith.constant 0 : index
    %c0_3 = arith.constant 0 : index
    %4 = vector.load %arg4[%c0_2, %c0_3] : memref<512x1xi32, #tpu.memory_space<vmem>>, vector<512x1xi32>
    %c384_i32 = arith.constant 384 : i32
    %5 = arith.muli %arg0, %c384_i32 : i32
    %6 = vector.broadcast %5 : i32 to vector<512x1xi32>
    %7 = arith.subi %3, %6 : vector<512x1xi32>
    %8 = tpu.iota {dimensions = array<i32: 1>} : vector<1x384xi32>
    %9 = vector.broadcast %7 : vector<512x1xi32> to vector<512x384xi32>
    %10 = vector.broadcast %8 : vector<1x384xi32> to vector<512x384xi32>
    %11 = arith.cmpi eq, %9, %10 : vector<512x384xi32>
    %c0_i32_4 = arith.constant 0 : i32
    %12 = vector.shape_cast %4 : vector<512x1xi32> to vector<512x1xi32>
    %13 = vector.broadcast %12 : vector<512x1xi32> to vector<512x384xi32>
    %14 = vector.broadcast %c0_i32_4 : i32 to vector<512x384xi32>
    %15 = arith.select %11, %13, %14 : vector<512x384xi1>, vector<512x384xi32>
    %cst = arith.constant dense<0> : vector<384xi32>
    %16 = vector.multi_reduction <add>, %15, %cst [0] : vector<512x384xi32> to vector<384xi32>
    %17 = vector.shape_cast %16 : vector<384xi32> to vector<1x384xi32>
    %c0_5 = arith.constant 0 : index
    %c0_6 = arith.constant 0 : index
    %18 = vector.load %arg5[%c0_5, %c0_6] : memref<1x384xi32, #tpu.memory_space<vmem>>, vector<1x384xi32>
    %19 = arith.addi %18, %17 : vector<1x384xi32>
    %c0_7 = arith.constant 0 : index
    %c0_8 = arith.constant 0 : index
    %20 = vector.load %arg5[%c0_7, %c0_8] : memref<1x384xi32, #tpu.memory_space<vmem>>, vector<1x384xi32>
    tpu.vector_store %arg5[%c0_7, %c0_8], %19 {strides = array<i32>} : memref<1x384xi32, #tpu.memory_space<vmem>>, vector<1x384xi32>,
    return
  }
  func.func @transform_0(%arg0: i32, %arg1: i32) -> (i32, i32) {
    %c0_i32 = arith.constant 0 : i32
    %c0_i32_0 = arith.constant 0 : i32
    return %c0_i32, %arg0 : i32, i32
  }
  func.func @transform_1(%arg0: i32, %arg1: i32) -> (i32, i32) {
    %c0_i32 = arith.constant 0 : i32
    %c0_i32_0 = arith.constant 0 : i32
    return %arg1, %c0_i32 : i32, i32
  }
  func.func @transform_2(%arg0: i32, %arg1: i32) -> (i32, i32) {
    %c0_i32 = arith.constant 0 : i32
    %c0_i32_0 = arith.constant 0 : i32
    return %arg1, %c0_i32 : i32, i32
  }
  func.func @transform_3(%arg0: i32, %arg1: i32) -> (i32, i32) {
    %c0_i32 = arith.constant 0 : i32
    %c0_i32_0 = arith.constant 0 : i32
    return %c0_i32, %arg0 : i32, i32
  }
}

</mosaic_0001>

<llo_original>
// kernel: tpu_custom_call.1
$region0: #{tpu_custom_call.1}
  #allocation0 [shape = 'u32[]', space=smem, size = 0x4, offset = 0x4, fixed_abs, tag = 'smem constant byte address 0x4 - core index']
  #allocation1 [shape = 'u32[144,128]{1,0:T(1,128)}', space=vmem, size = 0x12000, scoped, tag = 'internal scratch']
  %s0 = inlined_call_operand.vmem [shape: s32[1,384], index: 0, kind: input, shape index: {}]
  %s1 = inlined_call_operand.vmem [shape: s32[512,1], index: 1, kind: input, shape index: {}]
  %s2 = inlined_call_operand.vmem [shape: s32[512,1], index: 2, kind: input, shape index: {}]
  %s3 = inlined_call_operand.hbm [shape: s32[1,384], index: 3, kind: output, shape index: {}]
  %s4 = sld [smem:[#allocation0]]
  $region26: #{tpu_custom_call.1} parent=0
    _
  %s6 = ssub.s32 1, %s4
  %s7 = scalar_select 0, %s6, %s4
  $region1: #{tpu_custom_call.1} parent=0
    #allocation2 [shape = 'u8[1536]{0}', space=vmem, size = 0x800, scoped, tag = 'output window, operand 0, single buffered']
    #allocation3 [shape = 's32[1]{0}', space=sflag, size = 0x4, scoped, tag = 'scoped memory for tpu_custom_call.1']
    %8 = vsyncpa [#allocation3], 0
    // Predicated region
    $region2: #{tpu_custom_call.1} parent=1 // pred_check
      _
    $region3: #{tpu_custom_call.1} parent=1 // pred_check_branch
      %10 = sbr.rel (0) target = $region5
    $region4: #{tpu_custom_call.1} parent=1 // pred_region
      _
    $region5: #{tpu_custom_call.1} parent=1 // pred_fallthru
      _
    // Predicated region
    $region6: #{tpu_custom_call.1} parent=1 // pred_check
      _
    $region7: #{tpu_custom_call.1} parent=1 // pred_check_branch
      %12 = sbr.rel (0) target = $region9
    $region8: #{tpu_custom_call.1} parent=1 // pred_region
      _
    $region9: #{tpu_custom_call.1} parent=1 // pred_fallthru
      _
    // Predicated region
    $region10: #{tpu_custom_call.1} parent=1 // pred_check
      _
    $region11: #{tpu_custom_call.1} parent=1 // pred_check_branch
      %14 = sbr.rel (0) target = $region13
    $region12: #{tpu_custom_call.1} parent=1 // pred_region
      _
    $region13: #{tpu_custom_call.1} parent=1 // pred_fallthru
      _
    %p15 = scmp.eq.s32.totalorder 0, 0
    // Predicated region
    $region14: #{tpu_custom_call.1} parent=1 // pred_check
      %p16 = pneg %p15
    $region15: #{tpu_custom_call.1} parent=1 // pred_check_branch
      %18 = sbr.rel (%p16) target = $region17
    $region16: #{tpu_custom_call.1} parent=1 // pred_region
      %v19 = vld [vmem:[%s0] sm:$0x7]
      %v20 = vlaneseq
      %vm21 = vcmp.ge.s32.totalorder %v20, 0
      %vm22 = vcmp.lt.s32.totalorder %v20, 384
      %vm23 = vmand %vm21, %vm22
      %24 = vst.msk [vmem:[#allocation2] sm:$0x7] %vm23, %v19
    $region17: #{tpu_custom_call.1} parent=1 // pred_fallthru
      _
    %v25 = vld [vmem:[%s1] sm:$0xff]
    %v26 = vld [vmem:[%s1 + $0x8] sm:$0xff]
    %v27 = vld [vmem:[%s1 + $0x10] sm:$0xff]
    %v28 = vld [vmem:[%s1 + $0x18] sm:$0xff]
    %v29 = vld [vmem:[%s1 + $0x20] sm:$0xff]
    %v30 = vld [vmem:[%s1 + $0x28] sm:$0xff]
    %v31 = vld [vmem:[%s1 + $0x30] sm:$0xff]
    %v32 = vld [vmem:[%s1 + $0x38] sm:$0xff]
    %v33 = vld [vmem:[%s1 + $0x40] sm:$0xff]
    %v34 = vld [vmem:[%s1 + $0x48] sm:$0xff]
    %v35 = vld [vmem:[%s1 + $0x50] sm:$0xff]
    %v36 = vld [vmem:[%s1 + $0x58] sm:$0xff]
    %v37 = vld [vmem:[%s1 + $0x60] sm:$0xff]
    %v38 = vld [vmem:[%s1 + $0x68] sm:$0xff]
    %v39 = vld [vmem:[%s1 + $0x70] sm:$0xff]
    %v40 = vld [vmem:[%s1 + $0x78] sm:$0xff]
    %v41 = vld [vmem:[%s1 + $0x80] sm:$0xff]
    %v42 = vld [vmem:[%s1 + $0x88] sm:$0xff]
    %v43 = vld [vmem:[%s1 + $0x90] sm:$0xff]
    %v44 = vld [vmem:[%s1 + $0x98] sm:$0xff]
    %v45 = vld [vmem:[%s1 + $0xa0] sm:$0xff]
    %v46 = vld [vmem:[%s1 + $0xa8] sm:$0xff]
    %v47 = vld [vmem:[%s1 + $0xb0] sm:$0xff]
    %v48 = vld [vmem:[%s1 + $0xb8] sm:$0xff]
    %v49 = vld [vmem:[%s1 + $0xc0] sm:$0xff]
    %v50 = vld [vmem:[%s1 + $0xc8] sm:$0xff]
    %v51 = vld [vmem:[%s1 + $0xd0] sm:$0xff]
    %v52 = vld [vmem:[%s1 + $0xd8] sm:$0xff]
    %v53 = vld [vmem:[%s1 + $0xe0] sm:$0xff]
    %v54 = vld [vmem:[%s1 + $0xe8] sm:$0xff]
    %v55 = vld [vmem:[%s1 + $0xf0] sm:$0xff]
    %v56 = vld [vmem:[%s1 + $0xf8] sm:$0xff]
    %v57 = vld [vmem:[%s1 + $0x100] sm:$0xff]
    %v58 = vld [vmem:[%s1 + $0x108] sm:$0xff]
    %v59 = vld [vmem:[%s1 + $0x110] sm:$0xff]
    %v60 = vld [vmem:[%s1 + $0x118] sm:$0xff]
    %v61 = vld [vmem:[%s1 + $0x120] sm:$0xff]
    %v62 = vld [vmem:[%s1 + $0x128] sm:$0xff]
    %v63 = vld [vmem:[%s1 + $0x130] sm:$0xff]
    %v64 = vld [vmem:[%s1 + $0x138] sm:$0xff]
    %v65 = vld [vmem:[%s1 + $0x140] sm:$0xff]
    %v66 = vld [vmem:[%s1 + $0x148] sm:$0xff]
    %v67 = vld [vmem:[%s1 + $0x150] sm:$0xff]
    %v68 = vld [vmem:[%s1 + $0x158] sm:$0xff]
    %v69 = vld [vmem:[%s1 + $0x160] sm:$0xff]
    %v70 = vld [vmem:[%s1 + $0x168] sm:$0xff]
    %v71 = vld [vmem:[%s1 + $0x170] sm:$0xff]
    %v72 = vld [vmem:[%s1 + $0x178] sm:$0xff]
    %v73 = vld [vmem:[%s1 + $0x180] sm:$0xff]
    %v74 = vld [vmem:[%s1 + $0x188] sm:$0xff]
    %v75 = vld [vmem:[%s1 + $0x190] sm:$0xff]
    %v76 = vld [vmem:[%s1 + $0x198] sm:$0xff]
    %v77 = vld [vmem:[%s1 + $0x1a0] sm:$0xff]
    %v78 = vld [vmem:[%s1 + $0x1a8] sm:$0xff]
    %v79 = vld [vmem:[%s1 + $0x1b0] sm:$0xff]
    %v80 = vld [vmem:[%s1 + $0x1b8] sm:$0xff]
    %v81 = vld [vmem:[%s1 + $0x1c0] sm:$0xff]
    %v82 = vld [vmem:[%s1 + $0x1c8] sm:$0xff]
    %v83 = vld [vmem:[%s1 + $0x1d0] sm:$0xff]
    %v84 = vld [vmem:[%s1 + $0x1d8] sm:$0xff]
    %v85 = vld [vmem:[%s1 + $0x1e0] sm:$0xff]
    %v86 = vld [vmem:[%s1 + $0x1e8] sm:$0xff]
    %v87 = vld [vmem:[%s1 + $0x1f0] sm:$0xff]
    %v88 = vld [vmem:[%s1 + $0x1f8] sm:$0xff]
    %v89 = vld [vmem:[%s2] sm:$0xff]
    %v90 = vld [vmem:[%s2 + $0x8] sm:$0xff]
    %v91 = vld [vmem:[%s2 + $0x10] sm:$0xff]
    %v92 = vld [vmem:[%s2 + $0x18] sm:$0xff]
    %v93 = vld [vmem:[%s2 + $0x20] sm:$0xff]
    %v94 = vld [vmem:[%s2 + $0x28] sm:$0xff]
    %v95 = vld [vmem:[%s2 + $0x30] sm:$0xff]
    %v96 = vld [vmem:[%s2 + $0x38] sm:$0xff]
    %v97 = vld [vmem:[%s2 + $0x40] sm:$0xff]
    %v98 = vld [vmem:[%s2 + $0x48] sm:$0xff]
    %v99 = vld [vmem:[%s2 + $0x50] sm:$0xff]
    %v100 = vld [vmem:[%s2 + $0x58] sm:$0xff]
    %v101 = vld [vmem:[%s2 + $0x60] sm:$0xff]
    %v102 = vld [vmem:[%s2 + $0x68] sm:$0xff]
    %v103 = vld [vmem:[%s2 + $0x70] sm:$0xff]
    %v104 = vld [vmem:[%s2 + $0x78] sm:$0xff]
    %v105 = vld [vmem:[%s2 + $0x80] sm:$0xff]
    %v106 = vld [vmem:[%s2 + $0x88] sm:$0xff]
    %v107 = vld [vmem:[%s2 + $0x90] sm:$0xff]
    %v108 = vld [vmem:[%s2 + $0x98] sm:$0xff]
    %v109 = vld [vmem:[%s2 + $0xa0] sm:$0xff]
    %v110 = vld [vmem:[%s2 + $0xa8] sm:$0xff]
    %v111 = vld [vmem:[%s2 + $0xb0] sm:$0xff]
    %v112 = vld [vmem:[%s2 + $0xb8] sm:$0xff]
    %v113 = vld [vmem:[%s2 + $0xc0] sm:$0xff]
    %v114 = vld [vmem:[%s2 + $0xc8] sm:$0xff]
    %v115 = vld [vmem:[%s2 + $0xd0] sm:$0xff]
    %v116 = vld [vmem:[%s2 + $0xd8] sm:$0xff]
    %v117 = vld [vmem:[%s2 + $0xe0] sm:$0xff]
    %v118 = vld [vmem:[%s2 + $0xe8] sm:$0xff]
    %v119 = vld [vmem:[%s2 + $0xf0] sm:$0xff]
    %v120 = vld [vmem:[%s2 + $0xf8] sm:$0xff]
    %v121 = vld [vmem:[%s2 + $0x100] sm:$0xff]
    %v122 = vld [vmem:[%s2 + $0x108] sm:$0xff]
    %v123 = vld [vmem:[%s2 + $0x110] sm:$0xff]
    %v124 = vld [vmem:[%s2 + $0x118] sm:$0xff]
    %v125 = vld [vmem:[%s2 + $0x120] sm:$0xff]
    %v126 = vld [vmem:[%s2 + $0x128] sm:$0xff]
    %v127 = vld [vmem:[%s2 + $0x130] sm:$0xff]
    %v128 = vld [vmem:[%s2 + $0x138] sm:$0xff]
    %v129 = vld [vmem:[%s2 + $0x140] sm:$0xff]
    %v130 = vld [vmem:[%s2 + $0x148] sm:$0xff]
    %v131 = vld [vmem:[%s2 + $0x150] sm:$0xff]
    %v132 = vld [vmem:[%s2 + $0x158] sm:$0xff]
    %v133 = vld [vmem:[%s2 + $0x160] sm:$0xff]
    %v134 = vld [vmem:[%s2 + $0x168] sm:$0xff]
    %v135 = vld [vmem:[%s2 + $0x170] sm:$0xff]
    %v136 = vld [vmem:[%s2 + $0x178] sm:$0xff]
    %v137 = vld [vmem:[%s2 + $0x180] sm:$0xff]
    %v138 = vld [vmem:[%s2 + $0x188] sm:$0xff]
    %v139 = vld [vmem:[%s2 + $0x190] sm:$0xff]
    %v140 = vld [vmem:[%s2 + $0x198] sm:$0xff]
    %v141 = vld [vmem:[%s2 + $0x1a0] sm:$0xff]
    %v142 = vld [vmem:[%s2 + $0x1a8] sm:$0xff]
    %v143 = vld [vmem:[%s2 + $0x1b0] sm:$0xff]
    %v144 = vld [vmem:[%s2 + $0x1b8] sm:$0xff]
    %v145 = vld [vmem:[%s2 + $0x1c0] sm:$0xff]
    %v146 = vld [vmem:[%s2 + $0x1c8] sm:$0xff]
    %v147 = vld [vmem:[%s2 + $0x1d0] sm:$0xff]
    %v148 = vld [vmem:[%s2 + $0x1d8] sm:$0xff]
    %v149 = vld [vmem:[%s2 + $0x1e0] sm:$0xff]
    %v150 = vld [vmem:[%s2 + $0x1e8] sm:$0xff]
    %v151 = vld [vmem:[%s2 + $0x1f0] sm:$0xff]
    %v152 = vld [vmem:[%s2 + $0x1f8] sm:$0xff]
    %s153 = smul.u32 0, 384
    %v154 = vstv %s153
    %v155 = vsub.s32 %v25, %v154
    %v156 = vsub.s32 %v26, %v154
    %v157 = vsub.s32 %v27, %v154
    %v158 = vsub.s32 %v28, %v154
    %v159 = vsub.s32 %v29, %v154
    %v160 = vsub.s32 %v30, %v154
    %v161 = vsub.s32 %v31, %v154
    %v162 = vsub.s32 %v32, %v154
    %v163 = vsub.s32 %v33, %v154
    %v164 = vsub.s32 %v34, %v154
    %v165 = vsub.s32 %v35, %v154
    %v166 = vsub.s32 %v36, %v154
    %v167 = vsub.s32 %v37, %v154
    %v168 = vsub.s32 %v38, %v154
    %v169 = vsub.s32 %v39, %v154
    %v170 = vsub.s32 %v40, %v154
    %v171 = vsub.s32 %v41, %v154
    %v172 = vsub.s32 %v42, %v154
    %v173 = vsub.s32 %v43, %v154
    %v174 = vsub.s32 %v44, %v154
    %v175 = vsub.s32 %v45, %v154
    %v176 = vsub.s32 %v46, %v154
    %v177 = vsub.s32 %v47, %v154
    %v178 = vsub.s32 %v48, %v154
    %v179 = vsub.s32 %v49, %v154
    %v180 = vsub.s32 %v50, %v154
    %v181 = vsub.s32 %v51, %v154
    %v182 = vsub.s32 %v52, %v154
    %v183 = vsub.s32 %v53, %v154
    %v184 = vsub.s32 %v54, %v154
    %v185 = vsub.s32 %v55, %v154
    %v186 = vsub.s32 %v56, %v154
    %v187 = vsub.s32 %v57, %v154
    %v188 = vsub.s32 %v58, %v154
    %v189 = vsub.s32 %v59, %v154
    %v190 = vsub.s32 %v60, %v154
    %v191 = vsub.s32 %v61, %v154
    %v192 = vsub.s32 %v62, %v154
    %v193 = vsub.s32 %v63, %v154
    %v194 = vsub.s32 %v64, %v154
    %v195 = vsub.s32 %v65, %v154
    %v196 = vsub.s32 %v66, %v154
    %v197 = vsub.s32 %v67, %v154
    %v198 = vsub.s32 %v68, %v154
    %v199 = vsub.s32 %v69, %v154
    %v200 = vsub.s32 %v70, %v154
    %v201 = vsub.s32 %v71, %v154
    %v202 = vsub.s32 %v72, %v154
    %v203 = vsub.s32 %v73, %v154
    %v204 = vsub.s32 %v74, %v154
    %v205 = vsub.s32 %v75, %v154
    %v206 = vsub.s32 %v76, %v154
    %v207 = vsub.s32 %v77, %v154
    %v208 = vsub.s32 %v78, %v154
    %v209 = vsub.s32 %v79, %v154
    %v210 = vsub.s32 %v80, %v154
    %v211 = vsub.s32 %v81, %v154
    %v212 = vsub.s32 %v82, %v154
    %v213 = vsub.s32 %v83, %v154
    %v214 = vsub.s32 %v84, %v154
    %v215 = vsub.s32 %v85, %v154
    %v216 = vsub.s32 %v86, %v154
    %v217 = vsub.s32 %v87, %v154
    %v218 = vsub.s32 %v88, %v154
    %v219 = vlaneseq
    %v220 = vand.u32 %v219, 127
    %v221 = vadd.s32 %v220, 128
    %v222 = vadd.s32 %v220, 256
    %223 = vset.pattern.permute.xlu0 0
    %224 = vperm.xlu0 %223, %v155
    %v225 = vpop.permute.xlu0 %224
    %226 = vset.pattern.permute.xlu0 0
    %227 = vperm.xlu0 %226, %v156
    %v228 = vpop.permute.xlu0 %227
    %229 = vset.pattern.permute.xlu0 0
    %230 = vperm.xlu0 %229, %v157
    %v231 = vpop.permute.xlu0 %230
    %232 = vset.pattern.permute.xlu0 0
    %233 = vperm.xlu0 %232, %v158
    %v234 = vpop.permute.xlu0 %233
    %235 = vset.pattern.permute.xlu0 0
    %236 = vperm.xlu0 %235, %v159
    %v237 = vpop.permute.xlu0 %236
    %238 = vset.pattern.permute.xlu0 0
    %239 = vperm.xlu0 %238, %v160
    %v240 = vpop.permute.xlu0 %239
    %241 = vset.pattern.permute.xlu0 0
    %242 = vperm.xlu0 %241, %v161
    %v243 = vpop.permute.xlu0 %242
    %244 = vset.pattern.permute.xlu0 0
    %245 = vperm.xlu0 %244, %v162
    %v246 = vpop.permute.xlu0 %245
    %247 = vset.pattern.permute.xlu0 0
    %248 = vperm.xlu0 %247, %v163
    %v249 = vpop.permute.xlu0 %248
    %250 = vset.pattern.permute.xlu0 0
    %251 = vperm.xlu0 %250, %v164
    %v252 = vpop.permute.xlu0 %251
    %253 = vset.pattern.permute.xlu0 0
    %254 = vperm.xlu0 %253, %v165
    %v255 = vpop.permute.xlu0 %254
    %256 = vset.pattern.permute.xlu0 0
    %257 = vperm.xlu0 %256, %v166
    %v258 = vpop.permute.xlu0 %257
    %259 = vset.pattern.permute.xlu0 0
    %260 = vperm.xlu0 %259, %v167
    %v261 = vpop.permute.xlu0 %260
    %262 = vset.pattern.permute.xlu0 0
    %263 = vperm.xlu0 %262, %v168
    %v264 = vpop.permute.xlu0 %263
    %265 = vset.pattern.permute.xlu0 0
    %266 = vperm.xlu0 %265, %v169
    %v267 = vpop.permute.xlu0 %266
    %268 = vset.pattern.permute.xlu0 0
    %269 = vperm.xlu0 %268, %v170
    %v270 = vpop.permute.xlu0 %269
    %271 = vset.pattern.permute.xlu0 0
    %272 = vperm.xlu0 %271, %v171
    %v273 = vpop.permute.xlu0 %272
    %274 = vset.pattern.permute.xlu0 0
    %275 = vperm.xlu0 %274, %v172
    %v276 = vpop.permute.xlu0 %275
    %277 = vset.pattern.permute.xlu0 0
    %278 = vperm.xlu0 %277, %v173
    %v279 = vpop.permute.xlu0 %278
    %280 = vset.pattern.permute.xlu0 0
    %281 = vperm.xlu0 %280, %v174
    %v282 = vpop.permute.xlu0 %281
    %283 = vset.pattern.permute.xlu0 0
    %284 = vperm.xlu0 %283, %v175
    %v285 = vpop.permute.xlu0 %284
    %286 = vset.pattern.permute.xlu0 0
    %287 = vperm.xlu0 %286, %v176
    %v288 = vpop.permute.xlu0 %287
    %289 = vset.pattern.permute.xlu0 0
    %290 = vperm.xlu0 %289, %v177
    %v291 = vpop.permute.xlu0 %290
    %292 = vset.pattern.permute.xlu0 0
    %293 = vperm.xlu0 %292, %v178
    %v294 = vpop.permute.xlu0 %293
    %295 = vset.pattern.permute.xlu0 0
    %296 = vperm.xlu0 %295, %v179
    %v297 = vpop.permute.xlu0 %296
    %298 = vset.pattern.permute.xlu0 0
    %299 = vperm.xlu0 %298, %v180
    %v300 = vpop.permute.xlu0 %299
    %301 = vset.pattern.permute.xlu0 0
    %302 = vperm.xlu0 %301, %v181
    %v303 = vpop.permute.xlu0 %302
    %304 = vset.pattern.permute.xlu0 0
    %305 = vperm.xlu0 %304, %v182
    %v306 = vpop.permute.xlu0 %305
    %307 = vset.pattern.permute.xlu0 0
    %308 = vperm.xlu0 %307, %v183
    %v309 = vpop.permute.xlu0 %308
    %310 = vset.pattern.permute.xlu0 0
    %311 = vperm.xlu0 %310, %v184
    %v312 = vpop.permute.xlu0 %311
    %313 = vset.pattern.permute.xlu0 0
    %314 = vperm.xlu0 %313, %v185
    %v315 = vpop.permute.xlu0 %314
    %316 = vset.pattern.permute.xlu0 0
    %317 = vperm.xlu0 %316, %v186
    %v318 = vpop.permute.xlu0 %317
    %319 = vset.pattern.permute.xlu0 0
    %320 = vperm.xlu0 %319, %v187
    %v321 = vpop.permute.xlu0 %320
    %322 = vset.pattern.permute.xlu0 0
    %323 = vperm.xlu0 %322, %v188
    %v324 = vpop.permute.xlu0 %323
    %325 = vset.pattern.permute.xlu0 0
    %326 = vperm.xlu0 %325, %v189
    %v327 = vpop.permute.xlu0 %326
    %328 = vset.pattern.permute.xlu0 0
    %329 = vperm.xlu0 %328, %v190
    %v330 = vpop.permute.xlu0 %329
    %331 = vset.pattern.permute.xlu0 0
    %332 = vperm.xlu0 %331, %v191
    %v333 = vpop.permute.xlu0 %332
    %334 = vset.pattern.permute.xlu0 0
    %335 = vperm.xlu0 %334, %v192
    %v336 = vpop.permute.xlu0 %335
    %337 = vset.pattern.permute.xlu0 0
    %338 = vperm.xlu0 %337, %v193
    %v339 = vpop.permute.xlu0 %338
    %340 = vset.pattern.permute.xlu0 0
    %341 = vperm.xlu0 %340, %v194
    %v342 = vpop.permute.xlu0 %341
    %343 = vset.pattern.permute.xlu0 0
    %344 = vperm.xlu0 %343, %v195
    %v345 = vpop.permute.xlu0 %344
    %346 = vset.pattern.permute.xlu0 0
    %347 = vperm.xlu0 %346, %v196
    %v348 = vpop.permute.xlu0 %347
    %349 = vset.pattern.permute.xlu0 0
    %350 = vperm.xlu0 %349, %v197
    %v351 = vpop.permute.xlu0 %350
    %352 = vset.pattern.permute.xlu0 0
    %353 = vperm.xlu0 %352, %v198
    %v354 = vpop.permute.xlu0 %353
    %355 = vset.pattern.permute.xlu0 0
    %356 = vperm.xlu0 %355, %v199
    %v357 = vpop.permute.xlu0 %356
    %358 = vset.pattern.permute.xlu0 0
    %359 = vperm.xlu0 %358, %v200
    %v360 = vpop.permute.xlu0 %359
    %361 = vset.pattern.permute.xlu0 0
    %362 = vperm.xlu0 %361, %v201
    %v363 = vpop.permute.xlu0 %362
    %364 = vset.pattern.permute.xlu0 0
    %365 = vperm.xlu0 %364, %v202
    %v366 = vpop.permute.xlu0 %365
    %367 = vset.pattern.permute.xlu0 0
    %368 = vperm.xlu0 %367, %v203
    %v369 = vpop.permute.xlu0 %368
    %370 = vset.pattern.permute.xlu0 0
    %371 = vperm.xlu0 %370, %v204
    %v372 = vpop.permute.xlu0 %371
    %373 = vset.pattern.permute.xlu0 0
    %374 = vperm.xlu0 %373, %v205
    %v375 = vpop.permute.xlu0 %374
    %376 = vset.pattern.permute.xlu0 0
    %377 = vperm.xlu0 %376, %v206
    %v378 = vpop.permute.xlu0 %377
    %379 = vset.pattern.permute.xlu0 0
    %380 = vperm.xlu0 %379, %v207
    %v381 = vpop.permute.xlu0 %380
    %382 = vset.pattern.permute.xlu0 0
    %383 = vperm.xlu0 %382, %v208
    %v384 = vpop.permute.xlu0 %383
    %385 = vset.pattern.permute.xlu0 0
    %386 = vperm.xlu0 %385, %v209
    %v387 = vpop.permute.xlu0 %386
    %388 = vset.pattern.permute.xlu0 0
    %389 = vperm.xlu0 %388, %v210
    %v390 = vpop.permute.xlu0 %389
    %391 = vset.pattern.permute.xlu0 0
    %392 = vperm.xlu0 %391, %v211
    %v393 = vpop.permute.xlu0 %392
    %394 = vset.pattern.permute.xlu0 0
    %395 = vperm.xlu0 %394, %v212
    %v396 = vpop.permute.xlu0 %395
    %397 = vset.pattern.permute.xlu0 0
    %398 = vperm.xlu0 %397, %v213
    %v399 = vpop.permute.xlu0 %398
    %400 = vset.pattern.permute.xlu0 0
    %401 = vperm.xlu0 %400, %v214
    %v402 = vpop.permute.xlu0 %401
    %403 = vset.pattern.permute.xlu0 0
    %404 = vperm.xlu0 %403, %v215
    %v405 = vpop.permute.xlu0 %404
    %406 = vset.pattern.permute.xlu0 0
    %407 = vperm.xlu0 %406, %v216
    %v408 = vpop.permute.xlu0 %407
    %409 = vset.pattern.permute.xlu0 0
    %410 = vperm.xlu0 %409, %v217
    %v411 = vpop.permute.xlu0 %410
    %412 = vset.pattern.permute.xlu0 0
    %413 = vperm.xlu0 %412, %v218
    %v414 = vpop.permute.xlu0 %413
    %vm415 = vcmp.eq.s32.totalorder %v225, %v220
    %vm416 = vcmp.eq.s32.totalorder %v225, %v221
    %vm417 = vcmp.eq.s32.totalorder %v225, %v222
    %vm418 = vcmp.eq.s32.totalorder %v228, %v220
    %vm419 = vcmp.eq.s32.totalorder %v228, %v221
    %vm420 = vcmp.eq.s32.totalorder %v228, %v222
    %vm421 = vcmp.eq.s32.totalorder %v231, %v220
    %vm422 = vcmp.eq.s32.totalorder %v231, %v221
    %vm423 = vcmp.eq.s32.totalorder %v231, %v222
    %vm424 = vcmp.eq.s32.totalorder %v234, %v220
    %vm425 = vcmp.eq.s32.totalorder %v234, %v221
    %vm426 = vcmp.eq.s32.totalorder %v234, %v222
    %vm427 = vcmp.eq.s32.totalorder %v237, %v220
    %vm428 = vcmp.eq.s32.totalorder %v237, %v221
    %vm429 = vcmp.eq.s32.totalorder %v237, %v222
    %vm430 = vcmp.eq.s32.totalorder %v240, %v220
    %vm431 = vcmp.eq.s32.totalorder %v240, %v221
    %vm432 = vcmp.eq.s32.totalorder %v240, %v222
    %vm433 = vcmp.eq.s32.totalorder %v243, %v220
    %vm434 = vcmp.eq.s32.totalorder %v243, %v221
    %vm435 = vcmp.eq.s32.totalorder %v243, %v222
    %vm436 = vcmp.eq.s32.totalorder %v246, %v220
    %vm437 = vcmp.eq.s32.totalorder %v246, %v221
    %vm438 = vcmp.eq.s32.totalorder %v246, %v222
    %vm439 = vcmp.eq.s32.totalorder %v249, %v220
    %vm440 = vcmp.eq.s32.totalorder %v249, %v221
    %vm441 = vcmp.eq.s32.totalorder %v249, %v222
    %vm442 = vcmp.eq.s32.totalorder %v252, %v220
    %vm443 = vcmp.eq.s32.totalorder %v252, %v221
    %vm444 = vcmp.eq.s32.totalorder %v252, %v222
    %vm445 = vcmp.eq.s32.totalorder %v255, %v220
    %vm446 = vcmp.eq.s32.totalorder %v255, %v221
    %vm447 = vcmp.eq.s32.totalorder %v255, %v222
    %vm448 = vcmp.eq.s32.totalorder %v258, %v220
    %vm449 = vcmp.eq.s32.totalorder %v258, %v221
    %vm450 = vcmp.eq.s32.totalorder %v258, %v222
    %vm451 = vcmp.eq.s32.totalorder %v261, %v220
    %vm452 = vcmp.eq.s32.totalorder %v261, %v221
    %vm453 = vcmp.eq.s32.totalorder %v261, %v222
    %vm454 = vcmp.eq.s32.totalorder %v264, %v220
    %vm455 = vcmp.eq.s32.totalorder %v264, %v221
    %vm456 = vcmp.eq.s32.totalorder %v264, %v222
    %vm457 = vcmp.eq.s32.totalorder %v267, %v220
    %vm458 = vcmp.eq.s32.totalorder %v267, %v221
    %vm459 = vcmp.eq.s32.totalorder %v267, %v222
    %vm460 = vcmp.eq.s32.totalorder %v270, %v220
    %vm461 = vcmp.eq.s32.totalorder %v270, %v221
    %vm462 = vcmp.eq.s32.totalorder %v270, %v222
    %vm463 = vcmp.eq.s32.totalorder %v273, %v220
    %vm464 = vcmp.eq.s32.totalorder %v273, %v221
    %vm465 = vcmp.eq.s32.totalorder %v273, %v222
    %vm466 = vcmp.eq.s32.totalorder %v276, %v220
    %vm467 = vcmp.eq.s32.totalorder %v276, %v221
    %vm468 = vcmp.eq.s32.totalorder %v276, %v222
    %vm469 = vcmp.eq.s32.totalorder %v279, %v220
    %vm470 = vcmp.eq.s32.totalorder %v279, %v221
    %vm471 = vcmp.eq.s32.totalorder %v279, %v222
    %vm472 = vcmp.eq.s32.totalorder %v282, %v220
    %vm473 = vcmp.eq.s32.totalorder %v282, %v221
    %vm474 = vcmp.eq.s32.totalorder %v282, %v222
    %vm475 = vcmp.eq.s32.totalorder %v285, %v220
    %vm476 = vcmp.eq.s32.totalorder %v285, %v221
    %vm477 = vcmp.eq.s32.totalorder %v285, %v222
    %vm478 = vcmp.eq.s32.totalorder %v288, %v220
    %vm479 = vcmp.eq.s32.totalorder %v288, %v221
    %vm480 = vcmp.eq.s32.totalorder %v288, %v222
    %vm481 = vcmp.eq.s32.totalorder %v291, %v220
    %vm482 = vcmp.eq.s32.totalorder %v291, %v221
    %vm483 = vcmp.eq.s32.totalorder %v291, %v222
    %vm484 = vcmp.eq.s32.totalorder %v294, %v220
    %vm485 = vcmp.eq.s32.totalorder %v294, %v221
    %vm486 = vcmp.eq.s32.totalorder %v294, %v222
    %vm487 = vcmp.eq.s32.totalorder %v297, %v220
    %vm488 = vcmp.eq.s32.totalorder %v297, %v221
    %vm489 = vcmp.eq.s32.totalorder %v297, %v222
    %vm490 = vcmp.eq.s32.totalorder %v300, %v220
    %vm491 = vcmp.eq.s32.totalorder %v300, %v221
    %vm492 = vcmp.eq.s32.totalorder %v300, %v222
    %vm493 = vcmp.eq.s32.totalorder %v303, %v220
    %vm494 = vcmp.eq.s32.totalorder %v303, %v221
    %vm495 = vcmp.eq.s32.totalorder %v303, %v222
    %vm496 = vcmp.eq.s32.totalorder %v306, %v220
    %vm497 = vcmp.eq.s32.totalorder %v306, %v221
    %vm498 = vcmp.eq.s32.totalorder %v306, %v222
    %vm499 = vcmp.eq.s32.totalorder %v309, %v220
    %vm500 = vcmp.eq.s32.totalorder %v309, %v221
    %vm501 = vcmp.eq.s32.totalorder %v309, %v222
    %vm502 = vcmp.eq.s32.totalorder %v312, %v220
    %vm503 = vcmp.eq.s32.totalorder %v312, %v221
    %vm504 = vcmp.eq.s32.totalorder %v312, %v222
    %vm505 = vcmp.eq.s32.totalorder %v315, %v220
    %vm506 = vcmp.eq.s32.totalorder %v315, %v221
    %vm507 = vcmp.eq.s32.totalorder %v315, %v222
    %vm508 = vcmp.eq.s32.totalorder %v318, %v220
    %vm509 = vcmp.eq.s32.totalorder %v318, %v221
    %vm510 = vcmp.eq.s32.totalorder %v318, %v222
    %vm511 = vcmp.eq.s32.totalorder %v321, %v220
    %vm512 = vcmp.eq.s32.totalorder %v321, %v221
    %vm513 = vcmp.eq.s32.totalorder %v321, %v222
    %vm514 = vcmp.eq.s32.totalorder %v324, %v220
    %vm515 = vcmp.eq.s32.totalorder %v324, %v221
    %vm516 = vcmp.eq.s32.totalorder %v324, %v222
    %vm517 = vcmp.eq.s32.totalorder %v327, %v220
    %vm518 = vcmp.eq.s32.totalorder %v327, %v221
    %vm519 = vcmp.eq.s32.totalorder %v327, %v222
    %vm520 = vcmp.eq.s32.totalorder %v330, %v220
    %vm521 = vcmp.eq.s32.totalorder %v330, %v221
    %vm522 = vcmp.eq.s32.totalorder %v330, %v222
    %vm523 = vcmp.eq.s32.totalorder %v333, %v220
    %vm524 = vcmp.eq.s32.totalorder %v333, %v221
    %vm525 = vcmp.eq.s32.totalorder %v333, %v222
    %vm526 = vcmp.eq.s32.totalorder %v336, %v220
    %vm527 = vcmp.eq.s32.totalorder %v336, %v221
    %vm528 = vcmp.eq.s32.totalorder %v336, %v222
    %vm529 = vcmp.eq.s32.totalorder %v339, %v220
    %vm530 = vcmp.eq.s32.totalorder %v339, %v221
    %vm531 = vcmp.eq.s32.totalorder %v339, %v222
    %vm532 = vcmp.eq.s32.totalorder %v342, %v220
    %vm533 = vcmp.eq.s32.totalorder %v342, %v221
    %vm534 = vcmp.eq.s32.totalorder %v342, %v222
    %vm535 = vcmp.eq.s32.totalorder %v345, %v220
    %vm536 = vcmp.eq.s32.totalorder %v345, %v221
    %vm537 = vcmp.eq.s32.totalorder %v345, %v222
    %vm538 = vcmp.eq.s32.totalorder %v348, %v220
    %vm539 = vcmp.eq.s32.totalorder %v348, %v221
    %vm540 = vcmp.eq.s32.totalorder %v348, %v222
    %vm541 = vcmp.eq.s32.totalorder %v351, %v220
    %vm542 = vcmp.eq.s32.totalorder %v351, %v221
    %vm543 = vcmp.eq.s32.totalorder %v351, %v222
    %vm544 = vcmp.eq.s32.totalorder %v354, %v220
    %vm545 = vcmp.eq.s32.totalorder %v354, %v221
    %vm546 = vcmp.eq.s32.totalorder %v354, %v222
    %vm547 = vcmp.eq.s32.totalorder %v357, %v220
    %vm548 = vcmp.eq.s32.totalorder %v357, %v221
    %vm549 = vcmp.eq.s32.totalorder %v357, %v222
    %vm550 = vcmp.eq.s32.totalorder %v360, %v220
    %vm551 = vcmp.eq.s32.totalorder %v360, %v221
    %vm552 = vcmp.eq.s32.totalorder %v360, %v222
    %vm553 = vcmp.eq.s32.totalorder %v363, %v220
    %vm554 = vcmp.eq.s32.totalorder %v363, %v221
    %vm555 = vcmp.eq.s32.totalorder %v363, %v222
    %vm556 = vcmp.eq.s32.totalorder %v366, %v220
    %vm557 = vcmp.eq.s32.totalorder %v366, %v221
    %vm558 = vcmp.eq.s32.totalorder %v366, %v222
    %vm559 = vcmp.eq.s32.totalorder %v369, %v220
    %vm560 = vcmp.eq.s32.totalorder %v369, %v221
    %vm561 = vcmp.eq.s32.totalorder %v369, %v222
    %vm562 = vcmp.eq.s32.totalorder %v372, %v220
    %vm563 = vcmp.eq.s32.totalorder %v372, %v221
    %vm564 = vcmp.eq.s32.totalorder %v372, %v222
    %vm565 = vcmp.eq.s32.totalorder %v375, %v220
    %vm566 = vcmp.eq.s32.totalorder %v375, %v221
    %vm567 = vcmp.eq.s32.totalorder %v375, %v222
    %vm568 = vcmp.eq.s32.totalorder %v378, %v220
    %vm569 = vcmp.eq.s32.totalorder %v378, %v221
    %vm570 = vcmp.eq.s32.totalorder %v378, %v222
    %vm571 = vcmp.eq.s32.totalorder %v381, %v220
    %vm572 = vcmp.eq.s32.totalorder %v381, %v221
    %vm573 = vcmp.eq.s32.totalorder %v381, %v222
    %vm574 = vcmp.eq.s32.totalorder %v384, %v220
    %vm575 = vcmp.eq.s32.totalorder %v384, %v221
    %vm576 = vcmp.eq.s32.totalorder %v384, %v222
    %vm577 = vcmp.eq.s32.totalorder %v387, %v220
    %vm578 = vcmp.eq.s32.totalorder %v387, %v221
    %vm579 = vcmp.eq.s32.totalorder %v387, %v222
    %vm580 = vcmp.eq.s32.totalorder %v390, %v220
    %vm581 = vcmp.eq.s32.totalorder %v390, %v221
    %vm582 = vcmp.eq.s32.totalorder %v390, %v222
    %vm583 = vcmp.eq.s32.totalorder %v393, %v220
    %vm584 = vcmp.eq.s32.totalorder %v393, %v221
    %vm585 = vcmp.eq.s32.totalorder %v393, %v222
    %vm586 = vcmp.eq.s32.totalorder %v396, %v220
    %vm587 = vcmp.eq.s32.totalorder %v396, %v221
    %vm588 = vcmp.eq.s32.totalorder %v396, %v222
    %vm589 = vcmp.eq.s32.totalorder %v399, %v220
    %vm590 = vcmp.eq.s32.totalorder %v399, %v221
    %vm591 = vcmp.eq.s32.totalorder %v399, %v222
    %vm592 = vcmp.eq.s32.totalorder %v402, %v220
    %vm593 = vcmp.eq.s32.totalorder %v402, %v221
    %vm594 = vcmp.eq.s32.totalorder %v402, %v222
    %vm595 = vcmp.eq.s32.totalorder %v405, %v220
    %vm596 = vcmp.eq.s32.totalorder %v405, %v221
    %vm597 = vcmp.eq.s32.totalorder %v405, %v222
    %vm598 = vcmp.eq.s32.totalorder %v408, %v220
    %vm599 = vcmp.eq.s32.totalorder %v408, %v221
    %vm600 = vcmp.eq.s32.totalorder %v408, %v222
    %vm601 = vcmp.eq.s32.totalorder %v411, %v220
    %vm602 = vcmp.eq.s32.totalorder %v411, %v221
    %vm603 = vcmp.eq.s32.totalorder %v411, %v222
    %vm604 = vcmp.eq.s32.totalorder %v414, %v220
    %vm605 = vcmp.eq.s32.totalorder %v414, %v221
    %vm606 = vcmp.eq.s32.totalorder %v414, %v222
    %607 = vset.pattern.permute.xlu0 0
    %608 = vperm.xlu0 %607, %v89
    %v609 = vpop.permute.xlu0 %608
    %610 = vset.pattern.permute.xlu0 0
    %611 = vperm.xlu0 %610, %v90
    %v612 = vpop.permute.xlu0 %611
    %613 = vset.pattern.permute.xlu0 0
    %614 = vperm.xlu0 %613, %v91
    %v615 = vpop.permute.xlu0 %614
    %616 = vset.pattern.permute.xlu0 0
    %617 = vperm.xlu0 %616, %v92
    %v618 = vpop.permute.xlu0 %617
    %619 = vset.pattern.permute.xlu0 0
    %620 = vperm.xlu0 %619, %v93
    %v621 = vpop.permute.xlu0 %620
    %622 = vset.pattern.permute.xlu0 0
    %623 = vperm.xlu0 %622, %v94
    %v624 = vpop.permute.xlu0 %623
    %625 = vset.pattern.permute.xlu0 0
    %626 = vperm.xlu0 %625, %v95
    %v627 = vpop.permute.xlu0 %626
    %628 = vset.pattern.permute.xlu0 0
    %629 = vperm.xlu0 %628, %v96
    %v630 = vpop.permute.xlu0 %629
    %631 = vset.pattern.permute.xlu0 0
    %632 = vperm.xlu0 %631, %v97
    %v633 = vpop.permute.xlu0 %632
    %634 = vset.pattern.permute.xlu0 0
    %635 = vperm.xlu0 %634, %v98
    %v636 = vpop.permute.xlu0 %635
    %637 = vset.pattern.permute.xlu0 0
    %638 = vperm.xlu0 %637, %v99
    %v639 = vpop.permute.xlu0 %638
    %640 = vset.pattern.permute.xlu0 0
    %641 = vperm.xlu0 %640, %v100
    %v642 = vpop.permute.xlu0 %641
    %643 = vset.pattern.permute.xlu0 0
    %644 = vperm.xlu0 %643, %v101
    %v645 = vpop.permute.xlu0 %644
    %646 = vset.pattern.permute.xlu0 0
    %647 = vperm.xlu0 %646, %v102
    %v648 = vpop.permute.xlu0 %647
    %649 = vset.pattern.permute.xlu0 0
    %650 = vperm.xlu0 %649, %v103
    %v651 = vpop.permute.xlu0 %650
    %652 = vset.pattern.permute.xlu0 0
    %653 = vperm.xlu0 %652, %v104
    %v654 = vpop.permute.xlu0 %653
    %655 = vset.pattern.permute.xlu0 0
    %656 = vperm.xlu0 %655, %v105
    %v657 = vpop.permute.xlu0 %656
    %658 = vset.pattern.permute.xlu0 0
    %659 = vperm.xlu0 %658, %v106
    %v660 = vpop.permute.xlu0 %659
    %661 = vset.pattern.permute.xlu0 0
    %662 = vperm.xlu0 %661, %v107
    %v663 = vpop.permute.xlu0 %662
    %664 = vset.pattern.permute.xlu0 0
    %665 = vperm.xlu0 %664, %v108
    %v666 = vpop.permute.xlu0 %665
    %667 = vset.pattern.permute.xlu0 0
    %668 = vperm.xlu0 %667, %v109
    %v669 = vpop.permute.xlu0 %668
    %670 = vset.pattern.permute.xlu0 0
    %671 = vperm.xlu0 %670, %v110
    %v672 = vpop.permute.xlu0 %671
    %673 = vset.pattern.permute.xlu0 0
    %674 = vperm.xlu0 %673, %v111
    %v675 = vpop.permute.xlu0 %674
    %676 = vset.pattern.permute.xlu0 0
    %677 = vperm.xlu0 %676, %v112
    %v678 = vpop.permute.xlu0 %677
    %679 = vset.pattern.permute.xlu0 0
    %680 = vperm.xlu0 %679, %v113
    %v681 = vpop.permute.xlu0 %680
    %682 = vset.pattern.permute.xlu0 0
    %683 = vperm.xlu0 %682, %v114
    %v684 = vpop.permute.xlu0 %683
    %685 = vset.pattern.permute.xlu0 0
    %686 = vperm.xlu0 %685, %v115
    %v687 = vpop.permute.xlu0 %686
    %688 = vset.pattern.permute.xlu0 0
    %689 = vperm.xlu0 %688, %v116
    %v690 = vpop.permute.xlu0 %689
    %691 = vset.pattern.permute.xlu0 0
    %692 = vperm.xlu0 %691, %v117
    %v693 = vpop.permute.xlu0 %692
    %694 = vset.pattern.permute.xlu0 0
    %695 = vperm.xlu0 %694, %v118
    %v696 = vpop.permute.xlu0 %695
    %697 = vset.pattern.permute.xlu0 0
    %698 = vperm.xlu0 %697, %v119
    %v699 = vpop.permute.xlu0 %698
    %700 = vset.pattern.permute.xlu0 0
    %701 = vperm.xlu0 %700, %v120
    %v702 = vpop.permute.xlu0 %701
    %703 = vset.pattern.permute.xlu0 0
    %704 = vperm.xlu0 %703, %v121
    %v705 = vpop.permute.xlu0 %704
    %706 = vset.pattern.permute.xlu0 0
    %707 = vperm.xlu0 %706, %v122
    %v708 = vpop.permute.xlu0 %707
    %709 = vset.pattern.permute.xlu0 0
    %710 = vperm.xlu0 %709, %v123
    %v711 = vpop.permute.xlu0 %710
    %712 = vset.pattern.permute.xlu0 0
    %713 = vperm.xlu0 %712, %v124
    %v714 = vpop.permute.xlu0 %713
    %715 = vset.pattern.permute.xlu0 0
    %716 = vperm.xlu0 %715, %v125
    %v717 = vpop.permute.xlu0 %716
    %718 = vset.pattern.permute.xlu0 0
    %719 = vperm.xlu0 %718, %v126
    %v720 = vpop.permute.xlu0 %719
    %721 = vset.pattern.permute.xlu0 0
    %722 = vperm.xlu0 %721, %v127
    %v723 = vpop.permute.xlu0 %722
    %724 = vset.pattern.permute.xlu0 0
    %725 = vperm.xlu0 %724, %v128
    %v726 = vpop.permute.xlu0 %725
    %727 = vset.pattern.permute.xlu0 0
    %728 = vperm.xlu0 %727, %v129
    %v729 = vpop.permute.xlu0 %728
    %730 = vset.pattern.permute.xlu0 0
    %731 = vperm.xlu0 %730, %v130
    %v732 = vpop.permute.xlu0 %731
    %733 = vset.pattern.permute.xlu0 0
    %734 = vperm.xlu0 %733, %v131
    %v735 = vpop.permute.xlu0 %734
    %736 = vset.pattern.permute.xlu0 0
    %737 = vperm.xlu0 %736, %v132
    %v738 = vpop.permute.xlu0 %737
    %739 = vset.pattern.permute.xlu0 0
    %740 = vperm.xlu0 %739, %v133
    %v741 = vpop.permute.xlu0 %740
    %742 = vset.pattern.permute.xlu0 0
    %743 = vperm.xlu0 %742, %v134
    %v744 = vpop.permute.xlu0 %743
    %745 = vset.pattern.permute.xlu0 0
    %746 = vperm.xlu0 %745, %v135
    %v747 = vpop.permute.xlu0 %746
    %748 = vset.pattern.permute.xlu0 0
    %749 = vperm.xlu0 %748, %v136
    %v750 = vpop.permute.xlu0 %749
    %751 = vset.pattern.permute.xlu0 0
    %752 = vperm.xlu0 %751, %v137
    %v753 = vpop.permute.xlu0 %752
    %754 = vset.pattern.permute.xlu0 0
    %755 = vperm.xlu0 %754, %v138
    %v756 = vpop.permute.xlu0 %755
    %757 = vset.pattern.permute.xlu0 0
    %758 = vperm.xlu0 %757, %v139
    %v759 = vpop.permute.xlu0 %758
    %760 = vset.pattern.permute.xlu0 0
    %761 = vperm.xlu0 %760, %v140
    %v762 = vpop.permute.xlu0 %761
    %763 = vset.pattern.permute.xlu0 0
    %764 = vperm.xlu0 %763, %v141
    %v765 = vpop.permute.xlu0 %764
    %766 = vset.pattern.permute.xlu0 0
    %767 = vperm.xlu0 %766, %v142
    %v768 = vpop.permute.xlu0 %767
    %769 = vset.pattern.permute.xlu0 0
    %770 = vperm.xlu0 %769, %v143
    %v771 = vpop.permute.xlu0 %770
    %772 = vset.pattern.permute.xlu0 0
    %773 = vperm.xlu0 %772, %v144
    %v774 = vpop.permute.xlu0 %773
    %775 = vset.pattern.permute.xlu0 0
    %776 = vperm.xlu0 %775, %v145
    %v777 = vpop.permute.xlu0 %776
    %778 = vset.pattern.permute.xlu0 0
    %779 = vperm.xlu0 %778, %v146
    %v780 = vpop.permute.xlu0 %779
    %781 = vset.pattern.permute.xlu0 0
    %782 = vperm.xlu0 %781, %v147
    %v783 = vpop.permute.xlu0 %782
    %784 = vset.pattern.permute.xlu0 0
    %785 = vperm.xlu0 %784, %v148
    %v786 = vpop.permute.xlu0 %785
    %787 = vset.pattern.permute.xlu0 0
    %788 = vperm.xlu0 %787, %v149
    %v789 = vpop.permute.xlu0 %788
    %790 = vset.pattern.permute.xlu0 0
    %791 = vperm.xlu0 %790, %v150
    %v792 = vpop.permute.xlu0 %791
    %793 = vset.pattern.permute.xlu0 0
    %794 = vperm.xlu0 %793, %v151
    %v795 = vpop.permute.xlu0 %794
    %796 = vset.pattern.permute.xlu0 0
    %797 = vperm.xlu0 %796, %v152
    %v798 = vpop.permute.xlu0 %797
    %v799 = vsel %vm415, %v609, 0
    %v800 = vsel %vm416, %v609, 0
    %v801 = vsel %vm417, %v609, 0
    %v802 = vsel %vm418, %v612, 0
    %v803 = vsel %vm419, %v612, 0
    %v804 = vsel %vm420, %v612, 0
    %v805 = vsel %vm421, %v615, 0
    %v806 = vsel %vm422, %v615, 0
    %v807 = vsel %vm423, %v615, 0
    %v808 = vsel %vm424, %v618, 0
    %v809 = vsel %vm425, %v618, 0
    %v810 = vsel %vm426, %v618, 0
    %v811 = vsel %vm427, %v621, 0
    %v812 = vsel %vm428, %v621, 0
    %v813 = vsel %vm429, %v621, 0
    %v814 = vsel %vm430, %v624, 0
    %v815 = vsel %vm431, %v624, 0
    %v816 = vsel %vm432, %v624, 0
    %v817 = vsel %vm433, %v627, 0
    %v818 = vsel %vm434, %v627, 0
    %v819 = vsel %vm435, %v627, 0
    %v820 = vsel %vm436, %v630, 0
    %v821 = vsel %vm437, %v630, 0
    %v822 = vsel %vm438, %v630, 0
    %v823 = vsel %vm439, %v633, 0
    %v824 = vsel %vm440, %v633, 0
    %v825 = vsel %vm441, %v633, 0
    %v826 = vsel %vm442, %v636, 0
    %v827 = vsel %vm443, %v636, 0
    %v828 = vsel %vm444, %v636, 0
    %v829 = vsel %vm445, %v639, 0
    %v830 = vsel %vm446, %v639, 0
    %v831 = vsel %vm447, %v639, 0
    %v832 = vsel %vm448, %v642, 0
    %v833 = vsel %vm449, %v642, 0
    %v834 = vsel %vm450, %v642, 0
    %v835 = vsel %vm451, %v645, 0
    %v836 = vsel %vm452, %v645, 0
    %v837 = vsel %vm453, %v645, 0
    %v838 = vsel %vm454, %v648, 0
    %v839 = vsel %vm455, %v648, 0
    %v840 = vsel %vm456, %v648, 0
    %v841 = vsel %vm457, %v651, 0
    %v842 = vsel %vm458, %v651, 0
    %v843 = vsel %vm459, %v651, 0
    %v844 = vsel %vm460, %v654, 0
    %v845 = vsel %vm461, %v654, 0
    %v846 = vsel %vm462, %v654, 0
    %v847 = vsel %vm463, %v657, 0
    %v848 = vsel %vm464, %v657, 0
    %v849 = vsel %vm465, %v657, 0
    %v850 = vsel %vm466, %v660, 0
    %v851 = vsel %vm467, %v660, 0
    %v852 = vsel %vm468, %v660, 0
    %v853 = vsel %vm469, %v663, 0
    %v854 = vsel %vm470, %v663, 0
    %v855 = vsel %vm471, %v663, 0
    %v856 = vsel %vm472, %v666, 0
    %v857 = vsel %vm473, %v666, 0
    %v858 = vsel %vm474, %v666, 0
    %v859 = vsel %vm475, %v669, 0
    %v860 = vsel %vm476, %v669, 0
    %v861 = vsel %vm477, %v669, 0
    %v862 = vsel %vm478, %v672, 0
    %v863 = vsel %vm479, %v672, 0
    %v864 = vsel %vm480, %v672, 0
    %v865 = vsel %vm481, %v675, 0
    %v866 = vsel %vm482, %v675, 0
    %v867 = vsel %vm483, %v675, 0
    %v868 = vsel %vm484, %v678, 0
    %v869 = vsel %vm485, %v678, 0
    %v870 = vsel %vm486, %v678, 0
    %v871 = vsel %vm487, %v681, 0
    %v872 = vsel %vm488, %v681, 0
    %v873 = vsel %vm489, %v681, 0
    %v874 = vsel %vm490, %v684, 0
    %v875 = vsel %vm491, %v684, 0
    %v876 = vsel %vm492, %v684, 0
    %v877 = vsel %vm493, %v687, 0
    %v878 = vsel %vm494, %v687, 0
    %v879 = vsel %vm495, %v687, 0
    %v880 = vsel %vm496, %v690, 0
    %v881 = vsel %vm497, %v690, 0
    %v882 = vsel %vm498, %v690, 0
    %v883 = vsel %vm499, %v693, 0
    %v884 = vsel %vm500, %v693, 0
    %v885 = vsel %vm501, %v693, 0
    %v886 = vsel %vm502, %v696, 0
    %v887 = vsel %vm503, %v696, 0
    %v888 = vsel %vm504, %v696, 0
    %v889 = vsel %vm505, %v699, 0
    %v890 = vsel %vm506, %v699, 0
    %v891 = vsel %vm507, %v699, 0
    %v892 = vsel %vm508, %v702, 0
    %v893 = vsel %vm509, %v702, 0
    %v894 = vsel %vm510, %v702, 0
    %v895 = vsel %vm511, %v705, 0
    %v896 = vsel %vm512, %v705, 0
    %v897 = vsel %vm513, %v705, 0
    %v898 = vsel %vm514, %v708, 0
    %v899 = vsel %vm515, %v708, 0
    %v900 = vsel %vm516, %v708, 0
    %v901 = vsel %vm517, %v711, 0
    %v902 = vsel %vm518, %v711, 0
    %v903 = vsel %vm519, %v711, 0
    %v904 = vsel %vm520, %v714, 0
    %v905 = vsel %vm521, %v714, 0
    %v906 = vsel %vm522, %v714, 0
    %v907 = vsel %vm523, %v717, 0
    %v908 = vsel %vm524, %v717, 0
    %v909 = vsel %vm525, %v717, 0
    %v910 = vsel %vm526, %v720, 0
    %v911 = vsel %vm527, %v720, 0
    %v912 = vsel %vm528, %v720, 0
    %v913 = vsel %vm529, %v723, 0
    %v914 = vsel %vm530, %v723, 0
    %v915 = vsel %vm531, %v723, 0
    %v916 = vsel %vm532, %v726, 0
    %v917 = vsel %vm533, %v726, 0
    %v918 = vsel %vm534, %v726, 0
    %v919 = vsel %vm535, %v729, 0
    %v920 = vsel %vm536, %v729, 0
    %v921 = vsel %vm537, %v729, 0
    %v922 = vsel %vm538, %v732, 0
    %v923 = vsel %vm539, %v732, 0
    %v924 = vsel %vm540, %v732, 0
    %v925 = vsel %vm541, %v735, 0
    %v926 = vsel %vm542, %v735, 0
    %v927 = vsel %vm543, %v735, 0
    %v928 = vsel %vm544, %v738, 0
    %v929 = vsel %vm545, %v738, 0
    %v930 = vsel %vm546, %v738, 0
    %v931 = vsel %vm547, %v741, 0
    %v932 = vsel %vm548, %v741, 0
    %v933 = vsel %vm549, %v741, 0
    %v934 = vsel %vm550, %v744, 0
    %v935 = vsel %vm551, %v744, 0
    %v936 = vsel %vm552, %v744, 0
    %v937 = vsel %vm553, %v747, 0
    %v938 = vsel %vm554, %v747, 0
    %v939 = vsel %vm555, %v747, 0
    %v940 = vsel %vm556, %v750, 0
    %v941 = vsel %vm557, %v750, 0
    %v942 = vsel %vm558, %v750, 0
    %v943 = vsel %vm559, %v753, 0
    %v944 = vsel %vm560, %v753, 0
    %v945 = vsel %vm561, %v753, 0
    %v946 = vsel %vm562, %v756, 0
    %v947 = vsel %vm563, %v756, 0
    %v948 = vsel %vm564, %v756, 0
    %v949 = vsel %vm565, %v759, 0
    %v950 = vsel %vm566, %v759, 0
    %v951 = vsel %vm567, %v759, 0
    %v952 = vsel %vm568, %v762, 0
    %v953 = vsel %vm569, %v762, 0
    %v954 = vsel %vm570, %v762, 0
    %v955 = vsel %vm571, %v765, 0
    %v956 = vsel %vm572, %v765, 0
    %v957 = vsel %vm573, %v765, 0
    %v958 = vsel %vm574, %v768, 0
    %v959 = vsel %vm575, %v768, 0
    %v960 = vsel %vm576, %v768, 0
    %v961 = vsel %vm577, %v771, 0
    %v962 = vsel %vm578, %v771, 0
    %v963 = vsel %vm579, %v771, 0
    %v964 = vsel %vm580, %v774, 0
    %v965 = vsel %vm581, %v774, 0
    %v966 = vsel %vm582, %v774, 0
    %v967 = vsel %vm583, %v777, 0
    %v968 = vsel %vm584, %v777, 0
    %v969 = vsel %vm585, %v777, 0
    %v970 = vsel %vm586, %v780, 0
    %v971 = vsel %vm587, %v780, 0
    %v972 = vsel %vm588, %v780, 0
    %v973 = vsel %vm589, %v783, 0
    %v974 = vsel %vm590, %v783, 0
    %v975 = vsel %vm591, %v783, 0
    %v976 = vsel %vm592, %v786, 0
    %v977 = vsel %vm593, %v786, 0
    %v978 = vsel %vm594, %v786, 0
    %v979 = vsel %vm595, %v789, 0
    %v980 = vsel %vm596, %v789, 0
    %v981 = vsel %vm597, %v789, 0
    %v982 = vsel %vm598, %v792, 0
    %v983 = vsel %vm599, %v792, 0
    %v984 = vsel %vm600, %v792, 0
    %v985 = vsel %vm601, %v795, 0
    %v986 = vsel %vm602, %v795, 0
    %v987 = vsel %vm603, %v795, 0
    %v988 = vsel %vm604, %v798, 0
    %v989 = vsel %vm605, %v798, 0
    %v990 = vsel %vm606, %v798, 0
    %v991 = vadd.s32 %v799, %v805
    %v992 = vadd.s32 %v802, %v808
    %v993 = vadd.s32 %v991, %v811
    %v994 = vadd.s32 %v992, %v814
    %v995 = vadd.s32 %v993, %v817
    %v996 = vadd.s32 %v994, %v820
    %v997 = vadd.s32 %v995, %v823
    %v998 = vadd.s32 %v996, %v826
    %v999 = vadd.s32 %v997, %v829
    %v1000 = vadd.s32 %v998, %v832
    %v1001 = vadd.s32 %v999, %v835
    %v1002 = vadd.s32 %v1000, %v838
    %v1003 = vadd.s32 %v1001, %v841
    %v1004 = vadd.s32 %v1002, %v844
    %v1005 = vadd.s32 %v1003, %v847
    %v1006 = vadd.s32 %v1004, %v850
    %v1007 = vadd.s32 %v1005, %v853
    %v1008 = vadd.s32 %v1006, %v856
    %v1009 = vadd.s32 %v1007, %v859
    %v1010 = vadd.s32 %v1008, %v862
    %v1011 = vadd.s32 %v1009, %v865
    %v1012 = vadd.s32 %v1010, %v868
    %v1013 = vadd.s32 %v1011, %v871
    %v1014 = vadd.s32 %v1012, %v874
    %v1015 = vadd.s32 %v1013, %v877
    %v1016 = vadd.s32 %v1014, %v880
    %v1017 = vadd.s32 %v1015, %v883
    %v1018 = vadd.s32 %v1016, %v886
    %v1019 = vadd.s32 %v1017, %v889
    %v1020 = vadd.s32 %v1018, %v892
    %v1021 = vadd.s32 %v1019, %v895
    %v1022 = vadd.s32 %v1020, %v898
    %v1023 = vadd.s32 %v1021, %v901
    %v1024 = vadd.s32 %v1022, %v904
    %v1025 = vadd.s32 %v1023, %v907
    %v1026 = vadd.s32 %v1024, %v910
    %v1027 = vadd.s32 %v1025, %v913
    %v1028 = vadd.s32 %v1026, %v916
    %v1029 = vadd.s32 %v1027, %v919
    %v1030 = vadd.s32 %v1028, %v922
    %v1031 = vadd.s32 %v1029, %v925
    %v1032 = vadd.s32 %v1030, %v928
    %v1033 = vadd.s32 %v1031, %v931
    %v1034 = vadd.s32 %v1032, %v934
    %v1035 = vadd.s32 %v1033, %v937
    %v1036 = vadd.s32 %v1034, %v940
    %v1037 = vadd.s32 %v1035, %v943
    %v1038 = vadd.s32 %v1036, %v946
    %v1039 = vadd.s32 %v1037, %v949
    %v1040 = vadd.s32 %v1038, %v952
    %v1041 = vadd.s32 %v1039, %v955
    %v1042 = vadd.s32 %v1040, %v958
    %v1043 = vadd.s32 %v1041, %v961
    %v1044 = vadd.s32 %v1042, %v964
    %v1045 = vadd.s32 %v1043, %v967
    %v1046 = vadd.s32 %v1044, %v970
    %v1047 = vadd.s32 %v1045, %v973
    %v1048 = vadd.s32 %v1046, %v976
    %v1049 = vadd.s32 %v1047, %v979
    %v1050 = vadd.s32 %v1048, %v982
    %v1051 = vadd.s32 %v1049, %v985
    %v1052 = vadd.s32 %v1050, %v988
    %v1053 = vadd.s32 %v1051, %v1052
    %v1054 = vrot.slane %v1053, 4
    %v1055 = vadd.s32 %v1053, %v1054
    %v1056 = vrot.slane %v1055, 2
    %v1057 = vadd.s32 %v1055, %v1056
    %v1058 = vrot.slane %v1057, 1
    %v1059 = vadd.s32 %v1057, %v1058
    %v1060 = vadd.s32 %v800, %v806
    %v1061 = vadd.s32 %v803, %v809
    %v1062 = vadd.s32 %v1060, %v812
    %v1063 = vadd.s32 %v1061, %v815
    %v1064 = vadd.s32 %v1062, %v818
    %v1065 = vadd.s32 %v1063, %v821
    %v1066 = vadd.s32 %v1064, %v824
    %v1067 = vadd.s32 %v1065, %v827
    %v1068 = vadd.s32 %v1066, %v830
    %v1069 = vadd.s32 %v1067, %v833
    %v1070 = vadd.s32 %v1068, %v836
    %v1071 = vadd.s32 %v1069, %v839
    %v1072 = vadd.s32 %v1070, %v842
    %v1073 = vadd.s32 %v1071, %v845
    %v1074 = vadd.s32 %v1072, %v848
    %v1075 = vadd.s32 %v1073, %v851
    %v1076 = vadd.s32 %v1074, %v854
    %v1077 = vadd.s32 %v1075, %v857
    %v1078 = vadd.s32 %v1076, %v860
    %v1079 = vadd.s32 %v1077, %v863
    %v1080 = vadd.s32 %v1078, %v866
    %v1081 = vadd.s32 %v1079, %v869
    %v1082 = vadd.s32 %v1080, %v872
    %v1083 = vadd.s32 %v1081, %v875
    %v1084 = vadd.s32 %v1082, %v878
    %v1085 = vadd.s32 %v1083, %v881
    %v1086 = vadd.s32 %v1084, %v884
    %v1087 = vadd.s32 %v1085, %v887
    %v1088 = vadd.s32 %v1086, %v890
    %v1089 = vadd.s32 %v1087, %v893
    %v1090 = vadd.s32 %v1088, %v896
    %v1091 = vadd.s32 %v1089, %v899
    %v1092 = vadd.s32 %v1090, %v902
    %v1093 = vadd.s32 %v1091, %v905
    %v1094 = vadd.s32 %v1092, %v908
    %v1095 = vadd.s32 %v1093, %v911
    %v1096 = vadd.s32 %v1094, %v914
    %v1097 = vadd.s32 %v1095, %v917
    %v1098 = vadd.s32 %v1096, %v920
    %v1099 = vadd.s32 %v1097, %v923
    %v1100 = vadd.s32 %v1098, %v926
    %v1101 = vadd.s32 %v1099, %v929
    %v1102 = vadd.s32 %v1100, %v932
    %v1103 = vadd.s32 %v1101, %v935
    %v1104 = vadd.s32 %v1102, %v938
    %v1105 = vadd.s32 %v1103, %v941
    %v1106 = vadd.s32 %v1104, %v944
    %v1107 = vadd.s32 %v1105, %v947
    %v1108 = vadd.s32 %v1106, %v950
    %v1109 = vadd.s32 %v1107, %v953
    %v1110 = vadd.s32 %v1108, %v956
    %v1111 = vadd.s32 %v1109, %v959
    %v1112 = vadd.s32 %v1110, %v962
    %v1113 = vadd.s32 %v1111, %v965
    %v1114 = vadd.s32 %v1112, %v968
    %v1115 = vadd.s32 %v1113, %v971
    %v1116 = vadd.s32 %v1114, %v974
    %v1117 = vadd.s32 %v1115, %v977
    %v1118 = vadd.s32 %v1116, %v980
    %v1119 = vadd.s32 %v1117, %v983
    %v1120 = vadd.s32 %v1118, %v986
    %v1121 = vadd.s32 %v1119, %v989
    %v1122 = vadd.s32 %v1120, %v1121
    %v1123 = vrot.slane %v1122, 4
    %v1124 = vadd.s32 %v1122, %v1123
    %v1125 = vrot.slane %v1124, 2
    %v1126 = vadd.s32 %v1124, %v1125
    %v1127 = vrot.slane %v1126, 1
    %v1128 = vadd.s32 %v1126, %v1127
    %v1129 = vadd.s32 %v801, %v807
    %v1130 = vadd.s32 %v804, %v810
    %v1131 = vadd.s32 %v1129, %v813
    %v1132 = vadd.s32 %v1130, %v816
    %v1133 = vadd.s32 %v1131, %v819
    %v1134 = vadd.s32 %v1132, %v822
    %v1135 = vadd.s32 %v1133, %v825
    %v1136 = vadd.s32 %v1134, %v828
    %v1137 = vadd.s32 %v1135, %v831
    %v1138 = vadd.s32 %v1136, %v834
    %v1139 = vadd.s32 %v1137, %v837
    %v1140 = vadd.s32 %v1138, %v840
    %v1141 = vadd.s32 %v1139, %v843
    %v1142 = vadd.s32 %v1140, %v846
    %v1143 = vadd.s32 %v1141, %v849
    %v1144 = vadd.s32 %v1142, %v852
    %v1145 = vadd.s32 %v1143, %v855
    %v1146 = vadd.s32 %v1144, %v858
    %v1147 = vadd.s32 %v1145, %v861
    %v1148 = vadd.s32 %v1146, %v864
    %v1149 = vadd.s32 %v1147, %v867
    %v1150 = vadd.s32 %v1148, %v870
    %v1151 = vadd.s32 %v1149, %v873
    %v1152 = vadd.s32 %v1150, %v876
    %v1153 = vadd.s32 %v1151, %v879
    %v1154 = vadd.s32 %v1152, %v882
    %v1155 = vadd.s32 %v1153, %v885
    %v1156 = vadd.s32 %v1154, %v888
    %v1157 = vadd.s32 %v1155, %v891
    %v1158 = vadd.s32 %v1156, %v894
    %v1159 = vadd.s32 %v1157, %v897
    %v1160 = vadd.s32 %v1158, %v900
    %v1161 = vadd.s32 %v1159, %v903
    %v1162 = vadd.s32 %v1160, %v906
    %v1163 = vadd.s32 %v1161, %v909
    %v1164 = vadd.s32 %v1162, %v912
    %v1165 = vadd.s32 %v1163, %v915
    %v1166 = vadd.s32 %v1164, %v918
    %v1167 = vadd.s32 %v1165, %v921
    %v1168 = vadd.s32 %v1166, %v924
    %v1169 = vadd.s32 %v1167, %v927
    %v1170 = vadd.s32 %v1168, %v930
    %v1171 = vadd.s32 %v1169, %v933
    %v1172 = vadd.s32 %v1170, %v936
    %v1173 = vadd.s32 %v1171, %v939
    %v1174 = vadd.s32 %v1172, %v942
    %v1175 = vadd.s32 %v1173, %v945
    %v1176 = vadd.s32 %v1174, %v948
    %v1177 = vadd.s32 %v1175, %v951
    %v1178 = vadd.s32 %v1176, %v954
    %v1179 = vadd.s32 %v1177, %v957
    %v1180 = vadd.s32 %v1178, %v960
    %v1181 = vadd.s32 %v1179, %v963
    %v1182 = vadd.s32 %v1180, %v966
    %v1183 = vadd.s32 %v1181, %v969
    %v1184 = vadd.s32 %v1182, %v972
    %v1185 = vadd.s32 %v1183, %v975
    %v1186 = vadd.s32 %v1184, %v978
    %v1187 = vadd.s32 %v1185, %v981
    %v1188 = vadd.s32 %v1186, %v984
    %v1189 = vadd.s32 %v1187, %v987
    %v1190 = vadd.s32 %v1188, %v990
    %v1191 = vadd.s32 %v1189, %v1190
    %v1192 = vrot.slane %v1191, 4
    %v1193 = vadd.s32 %v1191, %v1192
    %v1194 = vrot.slane %v1193, 2
    %v1195 = vadd.s32 %v1193, %v1194
    %v1196 = vrot.slane %v1195, 1
    %v1197 = vadd.s32 %v1195, %v1196
    %v1198 = vld [vmem:[#allocation2] sm:$0x7]
    %v1199 = vcombine.low %v1059, %v1128
    %v1201 = vunpack.c.l.s4 1966171168
    %v1202 = vunpack.c.0.s8 %v1201
    %v1203 = vlaneseq
    %v1204 = vshrl.u32 %v1203, 7
    %v1205 = vsub.s32 %v1202, %v1204
    %v1206 = vrot.slane %v1199, %v1205
    %v1208 = vunpack.c.l.s4 1966171168
    %v1209 = vunpack.c.0.s8 %v1208
    %v1210 = vlaneseq
    %v1211 = vshrl.u32 %v1210, 7
    %v1212 = vsub.s32 %v1209, %v1211
    %v1213 = vrot.slane %v1197, %v1212
    %v1214 = vcombine.low %v1206, %v1213
    %v1216 = vunpack.c.l.s4 1966171168
    %v1217 = vunpack.c.0.s8 %v1216
    %v1218 = vlaneseq
    %v1219 = vshrl.u32 %v1218, 7
    %v1220 = vsub.s32 %v1217, %v1219
    %v1221 = vrot.slane %v1214, %v1220
    %v1222 = vadd.s32 %v1198, %v1221
    %v1223 = vlaneseq
    %vm1224 = vcmp.ge.s32.totalorder %v1223, 0
    %vm1225 = vcmp.lt.s32.totalorder %v1223, 384
    %vm1226 = vmand %vm1224, %vm1225
    %1227 = vst.msk [vmem:[#allocation2] sm:$0x7] %vm1226, %v1222
    // Predicated region
    $region18: #{tpu_custom_call.1} parent=1 // pred_check
      _
    $region19: #{tpu_custom_call.1} parent=1 // pred_check_branch
      %1229 = sbr.rel (0) target = $region21
    $region20: #{tpu_custom_call.1} parent=1 // pred_region
      %s1231 = ssub.s32 48, 48
      %1232 = vsyncadd [#allocation3], %s1231
      %s1234 = sshll.u32 [#allocation2], 4
      %s1235 = int_to_ptr.vmem [resolvable:$true] %s1234
      %1237 = dma.vmem_to_hbm [thread:$0]  %s1235, 48, %s3, [#allocation3]
    $region21: #{tpu_custom_call.1} parent=1 // pred_fallthru
      _
    // Predicated region
    $region22: #{tpu_custom_call.1} parent=1 // pred_check
      _
    $region23: #{tpu_custom_call.1} parent=1 // pred_check_branch
      %1239 = sbr.rel (0) target = $region25
    $region24: #{tpu_custom_call.1} parent=1 // pred_region
      %1240 = dma.done [#allocation3], 48
    $region25: #{tpu_custom_call.1} parent=1 // pred_fallthru
      _
    %1241 = vsyncpa [#allocation3], 1

</llo_original>
